<compile_context>
chip_gen: v6e
topology: v6e:2x2x1
jax: 0.10.0
libtpu: 0.0.40
codegen_flags: <defaults>
</compile_context>

<pallas_src>
import functools

import jax
import jax.numpy as jnp
from jax.experimental import pallas as pl
from jax.experimental.pallas import tpu as pltpu


# ---------------- Pruner "parameters" (deterministic, from config defaults) --
# method = 'hard_prune' -> alpha = 0.0001; beta = gamma = 1.0; max_ratio = 1.0
ALPHA = 0.0001
BETA = 1.0
GAMMA = 1.0
MAX_RATIO = 1.0
EPS = 1e-12

WIDE = 1024                   # lane-dense last dim (8 x 128 lanes)
SUBLANES = 8
TILE_ROWS = 512               # (512, 1024) f32 tile = 2 MiB per buffer
FUSED_BYTES_LIMIT = 4 << 20   # fuse whole tensor in VMEM below this size
VMEM_LIMIT = 32 << 20         # explicit scoped-VMEM budget (safe on v5e/v6e/v7x)


def _apply_mask(w, w_abs, c):
    """Shared mask math.  c = w_abs_mean * gamma (positive scalar).

    Uses log(max(eps, |w|/c)) == log(max(eps*c, |w|)) - log(c), so there is no
    per-element divide competing with the per-element log for the EUP slot.
    The eps clamp is rescaled (eps*c) to preserve the original semantics."""
    log_w = jnp.log(jnp.maximum(EPS * c, w_abs)) - jnp.log(c)
    if MAX_RATIO > 0:   # static parameter -> matches the torch branch
        log_w = jnp.minimum(MAX_RATIO, BETA * log_w)
    mask = jnp.maximum((ALPHA / BETA) * log_w, log_w)
    return w * mask


# ---------------- Fused single-pass kernel (whole tensor resident in VMEM) ---
def _fused_kernel(w_ref, o_ref, *, inv_n_gamma):
    w = w_ref[...]
    w_abs = jnp.abs(w)
    c = jnp.sum(w_abs) * inv_n_gamma          # = w_abs_mean * gamma
    o_ref[...] = _apply_mask(w, w_abs, c)


# ---------------- Tiled pass 1: sum(|w|) with deferred reduction -------------
def _abs_sum_kernel(w_ref, sum_ref, acc_ref):
    @pl.when(pl.program_id(0) == 0)
    def _():
        acc_ref[...] = jnp.zeros_like(acc_ref)

    # Element-wise partial sums: one VPU add per tile, hides under the DMA.
    acc_ref[...] += jnp.abs(w_ref[...])

    # Cross-lane reduction tree + (1,1) store happen exactly once.
    @pl.when(pl.program_id(0) == pl.num_programs(0) - 1)
    def _():
        sum_ref[0, 0] = jnp.sum(acc_ref[...])


# ---------------- Tiled pass 2: element-wise mask + multiply ------------------
def _prune_kernel(sum_ref, w_ref, o_ref, *, inv_n_gamma):
    w = w_ref[...]
    w_abs = jnp.abs(w)
    c = sum_ref[0, 0] * inv_n_gamma           # = w_abs_mean * gamma
    o_ref[...] = _apply_mask(w, w_abs, c)


def _to_slab(w_flat, row_multiple):
    """Zero-pad a flat f32 vector into a lane-dense (rows, WIDE) slab whose
    row count is a multiple of `row_multiple`.  Zero padding contributes 0 to
    sum(|w|); the true element count is used for the mean, and padded outputs
    are sliced off, so results match the unpadded semantics exactly."""
    n = w_flat.size
    rows = -(-n // WIDE)
    rows = -(-rows // row_multiple) * row_multiple
    n_pad = rows * WIDE
    if n_pad != n:
        w_flat = jnp.pad(w_flat, (0, n_pad - n))
    return w_flat.reshape(rows, WIDE), rows


def pruner_forward(w, *, fused_bytes_limit=FUSED_BYTES_LIMIT, tile_rows=TILE_ROWS):
    """Pallas implementation of Pruner.forward for arbitrary-shaped float w."""
    orig_shape = w.shape
    w_flat = w.reshape(-1).astype(jnp.float32)
    n = w_flat.size
    inv_n_gamma = GAMMA / float(n)            # compile-time constant

    if n * 4 <= fused_bytes_limit:
        # ---- Fused path: one HBM read, one HBM write, one launch. ----
        w2d, rows = _to_slab(w_flat, SUBLANES)
        out2d = pl.pallas_call(
            functools.partial(_fused_kernel, inv_n_gamma=inv_n_gamma),
            out_shape=jax.ShapeDtypeStruct((rows, WIDE), jnp.float32),
            grid=(1,),
            in_specs=[pl.BlockSpec((rows, WIDE), lambda i: (0, 0))],
            out_specs=pl.BlockSpec((rows, WIDE), lambda i: (0, 0)),
            compiler_params=pltpu.CompilerParams(vmem_limit_bytes=VMEM_LIMIT),
        )(w2d)
    else:
        # ---- Tiled two-pass path for tensors too large to keep resident. ----
        w2d, rows = _to_slab(w_flat, tile_rows)
        grid = rows // tile_rows

        # Pass 1: global sum(|w|).  'arbitrary' because the VMEM accumulator
        # carries across grid steps.
        # TODO(synk): on v7x, split this grid across both TensorCores with
        # per-core partial sums (~2x on pass 1); pl.Buffered(3) on the input
        # BlockSpec is also worth sweeping since per-tile compute is tiny.
        abs_sum = pl.pallas_call(
            _abs_sum_kernel,
            out_shape=jax.ShapeDtypeStruct((1, 1), jnp.float32),
            grid=(grid,),
            in_specs=[pl.BlockSpec((tile_rows, WIDE), lambda i: (i, 0))],
            out_specs=pl.BlockSpec((1, 1), lambda i: (0, 0)),
            scratch_shapes=[pltpu.VMEM((tile_rows, WIDE), jnp.float32)],
            compiler_params=pltpu.CompilerParams(
                dimension_semantics=("arbitrary",),
                vmem_limit_bytes=VMEM_LIMIT),
        )(w2d)

        # Pass 2: element-wise mask + multiply.  The raw abs-sum goes straight
        # in via SMEM (no intermediate XLA scalar op); the mean is folded into
        # the compile-time gamma/n constant.
        out2d = pl.pallas_call(
            functools.partial(_prune_kernel, inv_n_gamma=inv_n_gamma),
            out_shape=jax.ShapeDtypeStruct((rows, WIDE), jnp.float32),
            grid=(grid,),
            in_specs=[
                pl.BlockSpec(memory_space=pltpu.SMEM),          # abs-sum scalar
                pl.BlockSpec((tile_rows, WIDE), lambda i: (i, 0)),
            ],
            out_specs=pl.BlockSpec((tile_rows, WIDE), lambda i: (i, 0)),
            compiler_params=pltpu.CompilerParams(
                dimension_semantics=("parallel",),
                vmem_limit_bytes=VMEM_LIMIT),
        )(abs_sum, w2d)

    return out2d.reshape(-1)[:n].reshape(orig_shape)


def pruner_reference(w):
    """Pure-JAX reference mirroring the torch module exactly (with divide)."""
    w = w.astype(jnp.float32)
    w_abs = jnp.abs(w)
    w_abs_mean = jnp.mean(w_abs)
    log_w = jnp.log(jnp.maximum(EPS, w_abs / (w_abs_mean * GAMMA)))
    if MAX_RATIO > 0:
        log_w = jnp.minimum(MAX_RATIO, BETA * log_w)
    mask = jnp.maximum((ALPHA / BETA) * log_w, log_w)
    return w * mask


if __name__ == "__main__":
    key = jax.random.PRNGKey(0)
    k1, k2 = jax.random.split(key)

    # Small OIHW-style conv weight [2, 4, 16, 16] -> exercises the fused
    # single-kernel path (whole tensor resident in VMEM).
    w_small = jax.random.normal(k1, (2, 4, 16, 16), dtype=jnp.float32)
    out_small = jax.block_until_ready(pruner_forward(w_small))
    ref_small = pruner_reference(w_small)
    assert out_small.shape == w_small.shape and out_small.dtype == jnp.float32
    assert jnp.allclose(out_small, ref_small, rtol=1e-5, atol=1e-5), \
        "fused path mismatch vs reference"

    # Larger, non-tile-aligned weight -> forces the tiled two-pass path
    # (also exercises zero-padding + count-aware mean).
    w_big = jax.random.normal(k2, (3, 500, 32, 32), dtype=jnp.float32)
    out_big = jax.block_until_ready(pruner_forward(w_big, fused_bytes_limit=0))
    ref_big = pruner_reference(w_big)
    assert out_big.shape == w_big.shape and out_big.dtype == jnp.float32
    assert jnp.allclose(out_big, ref_big, rtol=1e-5, atol=1e-4), \
        "tiled path mismatch vs reference"

    print("KERNEL_OK")
</pallas_src>

<mosaic_0001>
module attributes {stable_mosaic.version = 11 : i64} {
  func.func @_fused_kernel(%arg0: i32, %arg1: memref<8x1024xf32, #tpu.memory_space<vmem>>, %arg2: memref<8x1024xf32, #tpu.memory_space<vmem>>) attributes {dimension_semantics = [#tpu.dimension_semantics<arbitrary>], iteration_bounds = array<i64: 1>, scalar_prefetch = 0 : i64, scratch_operands = 0 : i64, tpu.core_type = #tpu.core_type<tc>, window_params = [{pipeline_mode = #tpu.pipeline_mode<synchronous>, transform_indices = @transform_0, window_bounds = array<i64: 8, 1024>}, {pipeline_mode = #tpu.pipeline_mode<synchronous>, transform_indices = @transform_1, window_bounds = array<i64: 8, 1024>}]} {
    %c0 = arith.constant 0 : index
    %c0_0 = arith.constant 0 : index
    %0 = vector.load %arg1[%c0, %c0_0] : memref<8x1024xf32, #tpu.memory_space<vmem>>, vector<8x1024xf32>
    %1 = math.absf %0 : vector<8x1024xf32>
    %2 = vector.shape_cast %1 : vector<8x1024xf32> to vector<1x8x1024xf32>
    %cst = arith.constant dense<0.000000e+00> : vector<1xf32>
    %3 = vector.multi_reduction <add>, %2, %cst [1, 2] : vector<1x8x1024xf32> to vector<1xf32>
    %4 = vector.shape_cast %3 : vector<1xf32> to vector<1x1x1xf32>
    %5 = vector.extract %4[0, 0, 0] : f32 from vector<1x1x1xf32>
    %cst_1 = arith.constant 4.8828125E-4 : f32
    %6 = arith.mulf %5, %cst_1 : f32
    %cst_2 = arith.constant 9.99999996E-13 : f32
    %7 = arith.mulf %cst_2, %6 : f32
    %8 = vector.broadcast %7 : f32 to vector<8x1024xf32>
    %9 = arith.maximumf %8, %1 : vector<8x1024xf32>
    %10 = math.log %9 : vector<8x1024xf32>
    %11 = math.log %6 : f32
    %12 = vector.broadcast %11 : f32 to vector<8x1024xf32>
    %13 = arith.subf %10, %12 : vector<8x1024xf32>
    %cst_3 = arith.constant 1.000000e+00 : f32
    %14 = vector.broadcast %cst_3 : f32 to vector<8x1024xf32>
    %15 = arith.mulf %14, %13 : vector<8x1024xf32>
    %cst_4 = arith.constant 1.000000e+00 : f32
    %16 = vector.broadcast %cst_4 : f32 to vector<8x1024xf32>
    %17 = arith.minimumf %16, %15 : vector<8x1024xf32>
    %cst_5 = arith.constant 9.99999974E-5 : f32
    %18 = vector.broadcast %cst_5 : f32 to vector<8x1024xf32>
    %19 = arith.mulf %18, %17 : vector<8x1024xf32>
    %20 = arith.maximumf %19, %17 : vector<8x1024xf32>
    %21 = arith.mulf %0, %20 : vector<8x1024xf32>
    %c0_6 = arith.constant 0 : index
    %c0_7 = arith.constant 0 : index
    %22 = vector.load %arg2[%c0_6, %c0_7] : memref<8x1024xf32, #tpu.memory_space<vmem>>, vector<8x1024xf32>
    tpu.vector_store %arg2[%c0_6, %c0_7], %21 {strides = array<i32>} : memref<8x1024xf32, #tpu.memory_space<vmem>>, vector<8x1024xf32>,
    return
  }
  func.func @transform_0(%arg0: i32) -> (i32, i32) {
    %c0_i32 = arith.constant 0 : i32
    %c0_i32_0 = arith.constant 0 : i32
    %c0_i32_1 = arith.constant 0 : i32
    return %c0_i32, %c0_i32_0 : i32, i32
  }
  func.func @transform_1(%arg0: i32) -> (i32, i32) {
    %c0_i32 = arith.constant 0 : i32
    %c0_i32_0 = arith.constant 0 : i32
    %c0_i32_1 = arith.constant 0 : i32
    return %c0_i32, %c0_i32_0 : i32, i32
  }
}

</mosaic_0001>

<llo_original>
// kernel: tpu_custom_call.1
$region0: #{tpu_custom_call.1}
  #allocation0 [shape = 'u32[]', space=smem, size = 0x4, offset = 0x4, fixed_abs, tag = 'smem constant byte address 0x4 - core index']
  #allocation1 [shape = 'u32[144,128]{1,0:T(1,128)}', space=vmem, size = 0x12000, scoped, tag = 'internal scratch']
  %s0 = inlined_call_operand.hbm [shape: f32[8,1024], index: 0, kind: input, shape index: {}]
  %s1 = inlined_call_operand.hbm [shape: f32[8,1024], index: 1, kind: output, shape index: {}]
  %s2 = sld [smem:[#allocation0]]
  $region18: #{tpu_custom_call.1} parent=0
    _
  %s4 = ssub.s32 1, %s2
  %s5 = scalar_select 0, %s4, %s2
  $region1: #{tpu_custom_call.1} parent=0
    #allocation2 [shape = 'u8[32768]{0}', space=vmem, size = 0x8000, scoped, tag = 'input window, operand 0, single buffered']
    #allocation3 [shape = 's32[1]{0}', space=sflag, size = 0x4, scoped, tag = 'scoped memory for tpu_custom_call.1']
    #allocation4 [shape = 's32[1]{0}', space=sflag, size = 0x4, scoped, tag = 'scoped memory for tpu_custom_call.1']
    #allocation5 [shape = 'u8[32768]{0}', space=vmem, size = 0x8000, scoped, tag = 'output window, operand 0, single buffered']
    %6 = vsyncpa [#allocation3], 0
    %7 = vsyncpa [#allocation4], 0
    // Predicated region
    $region2: #{tpu_custom_call.1} parent=1 // pred_check
      _
    $region3: #{tpu_custom_call.1} parent=1 // pred_check_branch
      %9 = sbr.rel (0) target = $region5
    $region4: #{tpu_custom_call.1} parent=1 // pred_region
      %s11 = ssub.s32 1024, 1024
      %12 = vsyncadd [#allocation3], %s11
      %s14 = sshll.u32 [#allocation2], 4
      %s15 = int_to_ptr.vmem [resolvable:$true] %s14
      %17 = dma.hbm_to_vmem [thread:$0]  %s0, 1024, %s15, [#allocation3]
    $region5: #{tpu_custom_call.1} parent=1 // pred_fallthru
      _
    // Predicated region
    $region6: #{tpu_custom_call.1} parent=1 // pred_check
      _
    $region7: #{tpu_custom_call.1} parent=1 // pred_check_branch
      %19 = sbr.rel (0) target = $region9
    $region8: #{tpu_custom_call.1} parent=1 // pred_region
      %20 = dma.done [#allocation3], 1024
    $region9: #{tpu_custom_call.1} parent=1 // pred_fallthru
      _
    %v21 = vld [vmem:[#allocation2] sm:$0xff]
    %v22 = vld [vmem:[#allocation2 + $0x8] sm:$0xff]
    %v23 = vld [vmem:[#allocation2 + $0x10] sm:$0xff]
    %v24 = vld [vmem:[#allocation2 + $0x18] sm:$0xff]
    %v25 = vld [vmem:[#allocation2 + $0x20] sm:$0xff]
    %v26 = vld [vmem:[#allocation2 + $0x28] sm:$0xff]
    %v27 = vld [vmem:[#allocation2 + $0x30] sm:$0xff]
    %v28 = vld [vmem:[#allocation2 + $0x38] sm:$0xff]
    %v29 = vand.u32 2147483647, %v21
    %v30 = vand.u32 2147483647, %v22
    %v31 = vand.u32 2147483647, %v23
    %v32 = vand.u32 2147483647, %v24
    %v33 = vand.u32 2147483647, %v25
    %v34 = vand.u32 2147483647, %v26
    %v35 = vand.u32 2147483647, %v27
    %v36 = vand.u32 2147483647, %v28
    %v37 = vadd.f32 %v29, %v30
    %v38 = vadd.f32 %v37, %v31
    %v39 = vadd.f32 %v38, %v32
    %v40 = vadd.f32 %v39, %v33
    %v41 = vadd.f32 %v40, %v34
    %v42 = vadd.f32 %v41, %v35
    %v43 = vadd.f32 %v42, %v36
    %44 = vadd.xlane.f32.xlu0 %v43
    %v45 = vpop.xlane.xlu0 %44
    %v46 = vrot.slane %v45, 4
    %v47 = vadd.f32 %v45, %v46
    %v48 = vrot.slane %v47, 2
    %v49 = vadd.f32 %v47, %v48
    %v50 = vrot.slane %v49, 1
    %v51 = vadd.f32 %v49, %v50
    %s52 = vtos %v51
    %s53 = smul.f32 %s52, 0.00048828125
    %s54 = smul.f32 %s53, 1e-12
    %v55 = vstv %s54
    %v56 = vmax.f32 %v55, %v29
    %v57 = vmax.f32 %v55, %v30
    %v58 = vmax.f32 %v55, %v31
    %v59 = vmax.f32 %v55, %v32
    %v60 = vmax.f32 %v55, %v33
    %v61 = vmax.f32 %v55, %v34
    %v62 = vmax.f32 %v55, %v35
    %v63 = vmax.f32 %v55, %v36
    %v64 = vlog2.pop %v56
    %v65 = vmul.f32 %v64, 0.6931472
    %v66 = vlog2.pop %v57
    %v67 = vmul.f32 %v66, 0.6931472
    %v68 = vlog2.pop %v58
    %v69 = vmul.f32 %v68, 0.6931472
    %v70 = vlog2.pop %v59
    %v71 = vmul.f32 %v70, 0.6931472
    %v72 = vlog2.pop %v60
    %v73 = vmul.f32 %v72, 0.6931472
    %v74 = vlog2.pop %v61
    %v75 = vmul.f32 %v74, 0.6931472
    %v76 = vlog2.pop %v62
    %v77 = vmul.f32 %v76, 0.6931472
    %v78 = vlog2.pop %v63
    %v79 = vmul.f32 %v78, 0.6931472
    %v80 = vstv %s53
    %v81 = vlog2.pop %v80
    %v82 = vmul.f32 %v81, 0.6931472
    %s83 = vtos %v82
    %v84 = vstv %s83
    %v85 = vsub.f32 %v65, %v84
    %v86 = vsub.f32 %v67, %v84
    %v87 = vsub.f32 %v69, %v84
    %v88 = vsub.f32 %v71, %v84
    %v89 = vsub.f32 %v73, %v84
    %v90 = vsub.f32 %v75, %v84
    %v91 = vsub.f32 %v77, %v84
    %v92 = vsub.f32 %v79, %v84
    %v93 = vmin.f32 %v85, 1.0
    %v94 = vmin.f32 %v86, 1.0
    %v95 = vmin.f32 %v87, 1.0
    %v96 = vmin.f32 %v88, 1.0
    %v97 = vmin.f32 %v89, 1.0
    %v98 = vmin.f32 %v90, 1.0
    %v99 = vmin.f32 %v91, 1.0
    %v100 = vmin.f32 %v92, 1.0
    %v101 = vmul.f32 %v93, 0.0001
    %v102 = vmul.f32 %v94, 0.0001
    %v103 = vmul.f32 %v95, 0.0001
    %v104 = vmul.f32 %v96, 0.0001
    %v105 = vmul.f32 %v97, 0.0001
    %v106 = vmul.f32 %v98, 0.0001
    %v107 = vmul.f32 %v99, 0.0001
    %v108 = vmul.f32 %v100, 0.0001
    %v109 = vmax.f32 %v101, %v93
    %v110 = vmax.f32 %v102, %v94
    %v111 = vmax.f32 %v103, %v95
    %v112 = vmax.f32 %v104, %v96
    %v113 = vmax.f32 %v105, %v97
    %v114 = vmax.f32 %v106, %v98
    %v115 = vmax.f32 %v107, %v99
    %v116 = vmax.f32 %v108, %v100
    %v117 = vmul.f32 %v21, %v109
    %v118 = vmul.f32 %v22, %v110
    %v119 = vmul.f32 %v23, %v111
    %v120 = vmul.f32 %v24, %v112
    %v121 = vmul.f32 %v25, %v113
    %v122 = vmul.f32 %v26, %v114
    %v123 = vmul.f32 %v27, %v115
    %v124 = vmul.f32 %v28, %v116
    %125 = vst [vmem:[#allocation5] sm:$0xff] %v117
    %126 = vst [vmem:[#allocation5 + $0x8] sm:$0xff] %v118
    %127 = vst [vmem:[#allocation5 + $0x10] sm:$0xff] %v119
    %128 = vst [vmem:[#allocation5 + $0x18] sm:$0xff] %v120
    %129 = vst [vmem:[#allocation5 + $0x20] sm:$0xff] %v121
    %130 = vst [vmem:[#allocation5 + $0x28] sm:$0xff] %v122
    %131 = vst [vmem:[#allocation5 + $0x30] sm:$0xff] %v123
    %132 = vst [vmem:[#allocation5 + $0x38] sm:$0xff] %v124
    // Predicated region
    $region10: #{tpu_custom_call.1} parent=1 // pred_check
      _
    $region11: #{tpu_custom_call.1} parent=1 // pred_check_branch
      %134 = sbr.rel (0) target = $region13
    $region12: #{tpu_custom_call.1} parent=1 // pred_region
      %s136 = ssub.s32 1024, 1024
      %137 = vsyncadd [#allocation4], %s136
      %s139 = sshll.u32 [#allocation5], 4
      %s140 = int_to_ptr.vmem [resolvable:$true] %s139
      %142 = dma.vmem_to_hbm [thread:$0]  %s140, 1024, %s1, [#allocation4]
    $region13: #{tpu_custom_call.1} parent=1 // pred_fallthru
      _
    // Predicated region
    $region14: #{tpu_custom_call.1} parent=1 // pred_check
      _
    $region15: #{tpu_custom_call.1} parent=1 // pred_check_branch
      %144 = sbr.rel (0) target = $region17
    $region16: #{tpu_custom_call.1} parent=1 // pred_region
      %145 = dma.done [#allocation4], 1024
    $region17: #{tpu_custom_call.1} parent=1 // pred_fallthru
      _
    %146 = vsyncpa [#allocation3], 1
    %147 = vsyncpa [#allocation4], 1

</llo_original>
